<compile_context>
chip_gen: v6e
topology: v6e:2x2x1
jax: 0.10.0
libtpu: 0.0.40
codegen_flags: <defaults>
</compile_context>

<pallas_src>
import functools

import jax
import jax.numpy as jnp
from jax.experimental import pallas as pl
from jax.experimental.pallas import tpu as pltpu


def attention_kernel(enc_ref, hid_ref, wh_ref, we_ref, b_ref, v_ref, out_ref,
                     *, mm_dtype=jnp.float32):
    # enc_ref: (Bt, S, H) f32      encoder outputs tile (cast in-kernel if needed)
    # hid_ref: (Bt, H)    f32      last-layer hidden state rows
    # wh_ref : (H, H)     mm_dtype hidden half of the Linear weight (pre-transposed)
    # we_ref : (H, H)     mm_dtype encoder half of the Linear weight (pre-transposed)
    # b_ref  : (1, H)     f32      Linear bias
    # v_ref  : (1, H)     f32      scoring vector
    # out_ref: (Bt, 1, S) f32      softmax attention weights (lane-dense in S)
    bt, s, h = enc_ref.shape

    # Hidden projection (+ bias), fused in-kernel: (Bt,H) x (H,H) -> (Bt,H).
    hb = jnp.dot(hid_ref[...].astype(mm_dtype), wh_ref[...],
                 preferred_element_type=jnp.float32) + b_ref[...]        # (Bt,H) f32

    # Encoder projection: one (Bt*S, H) x (H, H) MXU matmul with f32 accumulation.
    # The (optional) down-cast happens here, hidden under the DMA — the HBM tile
    # itself is read as f32 exactly once.
    enc2d = enc_ref[...].reshape(bt * s, h).astype(mm_dtype)
    proj = jnp.dot(enc2d, we_ref[...],
                   preferred_element_type=jnp.float32)                   # (Bt*S,H) f32

    # energy = tanh(encoder proj + hidden proj + bias) in f32 (EUP/VPU).
    energy = jnp.tanh(proj.reshape(bt, s, h) + hb[:, None, :])

    # scores = <v, energy> over the feature axis, produced directly as a
    # lane-dense (Bt, 1, S) row via a batched MXU dot (M = 1).  HBM-bound at
    # these sizes, so the small MXU push is hidden; a VPU mul + lane-reduce is
    # the fallback if this slot ever saturates.
    vb = jnp.broadcast_to(v_ref[...].reshape(1, 1, h), (bt, 1, h))
    scores = jax.lax.dot_general(
        vb, energy,
        dimension_numbers=(((2,), (2,)), ((0,), (0,))),
        preferred_element_type=jnp.float32)                              # (Bt,1,S)

    # softmax along the sequence (lane) axis
    m = jnp.max(scores, axis=-1, keepdims=True)
    p = jnp.exp(scores - m)
    denom = jnp.sum(p, axis=-1, keepdims=True)
    out_ref[...] = (p * pl.reciprocal(denom, approx=True)).astype(out_ref.dtype)


def _vmem_capacity_bytes():
    """Generation-aware VMEM size; conservative fallback (v7x = 64 MiB)."""
    try:
        return int(pltpu.get_tpu_info().vmem_capacity_bytes)
    except Exception:
        return 64 << 20


def _pick_block_b(B, S, H, vmem_budget_bytes):
    """Largest batch tile that keeps the per-step working set within budget.

    Per batch row the kernel holds the f32 encoder tile (double-buffered input,
    2*4 B/elem) plus ~3 f32 intermediates (proj / energy / exp) of the same
    footprint -> ~20 B per element.  Tile size, not grid-step count, is what
    buys HBM bandwidth in this mem-bound kernel.
    """
    bytes_per_batch = S * H * 20
    bt = max(1, vmem_budget_bytes // max(bytes_per_batch, 1))
    return int(min(B, bt))


def attention_forward(encoder_outputs, hidden, W, b, v, *,
                      block_b=None, matmul_dtype=None):
    """encoder_outputs: (B, S, H) f32; hidden: (L, B, H) f32;
    W: (H, 2H) PyTorch Linear weight; b: (H,); v: (H,). Returns (B, 1, S) f32."""
    B, S, H = encoder_outputs.shape
    hidden_last = hidden[-1]                                   # (B, H)

    # Split the 2H->H Linear:  cat(h, e) @ W.T == h @ W[:, :H].T + e @ W[:, H:].T
    W_h = W[:, :H].T                                           # (H, H) hidden half
    W_e = W[:, H:].T                                           # (H, H) encoder half

    # Low-precision MXU path only when H is large enough to matter; otherwise
    # stay f32 end-to-end (better accuracy, same speed when HBM-bound).
    if matmul_dtype is None:
        matmul_dtype = jnp.bfloat16 if H >= 256 else jnp.float32
    W_h = W_h.astype(matmul_dtype)
    W_e = W_e.astype(matmul_dtype)
    b2 = b.reshape(1, H).astype(jnp.float32)
    v2 = v.reshape(1, H).astype(jnp.float32)
    encoder_outputs = encoder_outputs.astype(jnp.float32)      # no standalone bf16 pass
    hidden_last = hidden_last.astype(jnp.float32)

    vmem_cap = _vmem_capacity_bytes()
    if block_b is None:
        block_b = _pick_block_b(B, S, H, vmem_budget_bytes=vmem_cap // 4)
        num_steps = pl.cdiv(B, block_b)
        block_b = pl.cdiv(B, num_steps)        # rebalance -> minimal padding
    else:
        num_steps = pl.cdiv(B, block_b)

    # Pad B up to a multiple of the tile (trailing rows are sliced off below);
    # avoids both degenerate bt=1 grids for odd B and silently dropped batches.
    B_pad = num_steps * block_b
    if B_pad != B:
        pad = B_pad - B
        encoder_outputs = jnp.pad(encoder_outputs, ((0, pad), (0, 0), (0, 0)))
        hidden_last = jnp.pad(hidden_last, ((0, pad), (0, 0)))

    vmem_limit = int(min(vmem_cap * 3 // 4, 96 << 20))

    out = pl.pallas_call(
        functools.partial(attention_kernel, mm_dtype=matmul_dtype),
        out_shape=jax.ShapeDtypeStruct((B_pad, 1, S), jnp.float32),
        grid_spec=pltpu.PrefetchScalarGridSpec(
            num_scalar_prefetch=0,
            grid=(num_steps,),
            in_specs=[
                pl.BlockSpec((block_b, S, H), lambda i: (i, 0, 0)),  # encoder tile (f32)
                pl.BlockSpec((block_b, H), lambda i: (i, 0)),        # hidden rows
                pl.BlockSpec((H, H), lambda i: (0, 0)),              # W_h (const)
                pl.BlockSpec((H, H), lambda i: (0, 0)),              # W_e (const)
                pl.BlockSpec((1, H), lambda i: (0, 0)),              # bias (const)
                pl.BlockSpec((1, H), lambda i: (0, 0)),              # v    (const)
            ],
            out_specs=pl.BlockSpec((block_b, 1, S), lambda i: (i, 0, 0)),
        ),
        compiler_params=pltpu.CompilerParams(
            dimension_semantics=("parallel",),
            vmem_limit_bytes=vmem_limit,
        ),
    )(encoder_outputs, hidden_last, W_h, W_e, b2, v2)

    return out[:B] if B_pad != B else out


def attention_reference(encoder_outputs, hidden, W, b, v):
    B, S, H = encoder_outputs.shape
    h = jnp.broadcast_to(hidden[-1][:, None, :], (B, S, H))
    x = jnp.concatenate([h, encoder_outputs], axis=2)             # (B, S, 2H)
    energy = jnp.tanh(jnp.einsum("bsk,hk->bsh", x, W) + b)        # (B, S, H)
    attn = jnp.sum(v * energy, axis=2)                            # (B, S)
    return jax.nn.softmax(attn, axis=1)[:, None, :]               # (B, 1, S)


if __name__ == "__main__":
    B, S, H, L = 2, 8, 32, 2

    key = jax.random.PRNGKey(0)
    k_enc, k_hid, k_w, k_b, k_v = jax.random.split(key, 5)

    encoder_outputs = jax.random.normal(k_enc, (B, S, H), dtype=jnp.float32)
    hidden = jax.random.normal(k_hid, (L, B, H), dtype=jnp.float32)

    # deterministic parameter init (shapes from nn.Linear(2H, H) and nn.Parameter(rand(H)))
    bound = 1.0 / jnp.sqrt(2.0 * H)
    W = jax.random.uniform(k_w, (H, 2 * H), jnp.float32, -bound, bound)
    b = jax.random.uniform(k_b, (H,), jnp.float32, -bound, bound)
    v = jax.random.uniform(k_v, (H,), jnp.float32, 0.0, 1.0)       # torch.rand

    out = jax.block_until_ready(attention_forward(encoder_outputs, hidden, W, b, v))
    ref = attention_reference(encoder_outputs, hidden, W, b, v)

    assert out.shape == (B, 1, S), out.shape
    # f32 matmul path at this H; residual error comes from the approximate
    # softmax reciprocal (~1e-4) and transcendental implementation differences.
    max_err = float(jnp.max(jnp.abs(out - ref)))
    assert jnp.allclose(out, ref, atol=5e-3, rtol=5e-3), f"mismatch vs reference: {max_err}"

    print("KERNEL_OK")
</pallas_src>

<mosaic_0001>
module attributes {stable_mosaic.version = 11 : i64} {
  func.func @attention_kernel(%arg0: i32, %arg1: memref<2x8x32xf32, #tpu.memory_space<vmem>>, %arg2: memref<2x32xf32, #tpu.memory_space<vmem>>, %arg3: memref<32x32xf32, #tpu.memory_space<vmem>>, %arg4: memref<32x32xf32, #tpu.memory_space<vmem>>, %arg5: memref<1x32xf32, #tpu.memory_space<vmem>>, %arg6: memref<1x32xf32, #tpu.memory_space<vmem>>, %arg7: memref<2x1x8xf32, #tpu.memory_space<vmem>>) attributes {dimension_semantics = [#tpu.dimension_semantics<parallel>], iteration_bounds = array<i64: 1>, scalar_prefetch = 0 : i64, scratch_operands = 0 : i64, tpu.core_type = #tpu.core_type<tc>, window_params = [{transform_indices = @transform_0, window_bounds = array<i64: 2, 8, 32>}, {transform_indices = @transform_1, window_bounds = array<i64: 2, 32>}, {pipeline_mode = #tpu.pipeline_mode<synchronous>, transform_indices = @transform_2, window_bounds = array<i64: 32, 32>}, {pipeline_mode = #tpu.pipeline_mode<synchronous>, transform_indices = @transform_3, window_bounds = array<i64: 32, 32>}, {pipeline_mode = #tpu.pipeline_mode<synchronous>, transform_indices = @transform_4, window_bounds = array<i64: 1, 32>}, {pipeline_mode = #tpu.pipeline_mode<synchronous>, transform_indices = @transform_5, window_bounds = array<i64: 1, 32>}, {transform_indices = @transform_6, window_bounds = array<i64: 2, 1, 8>}]} {
    %c0 = arith.constant 0 : index
    %c0_0 = arith.constant 0 : index
    %0 = vector.load %arg2[%c0, %c0_0] : memref<2x32xf32, #tpu.memory_space<vmem>>, vector<2x32xf32>
    %c0_1 = arith.constant 0 : index
    %c0_2 = arith.constant 0 : index
    %1 = vector.load %arg3[%c0_1, %c0_2] : memref<32x32xf32, #tpu.memory_space<vmem>>, vector<32x32xf32>
    %cst = arith.constant dense<0.000000e+00> : vector<2x32xf32>
    %2 = tpu.matmul %0, %1, %cst {dimension_numbers = #tpu.dot_dimension_numbers<[1], [0], [0], [1], [0, 0, 1, 1], [], []>} : vector<2x32xf32>, vector<32x32xf32>, vector<2x32xf32> -> vector<2x32xf32>
    %c0_3 = arith.constant 0 : index
    %c0_4 = arith.constant 0 : index
    %3 = vector.load %arg5[%c0_3, %c0_4] : memref<1x32xf32, #tpu.memory_space<vmem>>, vector<1x32xf32>
    %4 = vector.broadcast %3 : vector<1x32xf32> to vector<2x32xf32>
    %5 = arith.addf %2, %4 : vector<2x32xf32>
    %c0_5 = arith.constant 0 : index
    %c0_6 = arith.constant 0 : index
    %c0_7 = arith.constant 0 : index
    %6 = vector.load %arg1[%c0_5, %c0_6, %c0_7] : memref<2x8x32xf32, #tpu.memory_space<vmem>>, vector<2x8x32xf32>
    %7 = vector.shape_cast %6 : vector<2x8x32xf32> to vector<16x32xf32>
    %c0_8 = arith.constant 0 : index
    %c0_9 = arith.constant 0 : index
    %8 = vector.load %arg4[%c0_8, %c0_9] : memref<32x32xf32, #tpu.memory_space<vmem>>, vector<32x32xf32>
    %cst_10 = arith.constant dense<0.000000e+00> : vector<16x32xf32>
    %9 = tpu.matmul %7, %8, %cst_10 {dimension_numbers = #tpu.dot_dimension_numbers<[1], [0], [0], [1], [0, 0, 1, 1], [], []>} : vector<16x32xf32>, vector<32x32xf32>, vector<16x32xf32> -> vector<16x32xf32>
    %10 = vector.shape_cast %9 : vector<16x32xf32> to vector<2x8x32xf32>
    %11 = vector.shape_cast %5 : vector<2x32xf32> to vector<2x1x32xf32>
    %12 = vector.broadcast %11 : vector<2x1x32xf32> to vector<2x8x32xf32>
    %13 = arith.addf %10, %12 : vector<2x8x32xf32>
    %14 = math.tanh %13 : vector<2x8x32xf32>
    %c0_11 = arith.constant 0 : index
    %c0_12 = arith.constant 0 : index
    %15 = vector.load %arg6[%c0_11, %c0_12] : memref<1x32xf32, #tpu.memory_space<vmem>>, vector<1x32xf32>
    %16 = vector.shape_cast %15 : vector<1x32xf32> to vector<1x1x32xf32>
    %17 = vector.shape_cast %16 : vector<1x1x32xf32> to vector<1x1x32xf32>
    %18 = vector.broadcast %17 : vector<1x1x32xf32> to vector<2x1x32xf32>
    %cst_13 = arith.constant dense<0.000000e+00> : vector<2x1x8xf32>
    %19 = tpu.matmul %18, %14, %cst_13 {dimension_numbers = #tpu.dot_dimension_numbers<[2], [2], [1], [1], [0, 0, 0, 1, 1, 1], [0], [0]>} : vector<2x1x32xf32>, vector<2x8x32xf32>, vector<2x1x8xf32> -> vector<2x1x8xf32>
    %cst_14 = arith.constant dense<0xFF800000> : vector<2x1xf32>
    %20 = vector.multi_reduction <maximumf>, %19, %cst_14 [2] : vector<2x1x8xf32> to vector<2x1xf32>
    %21 = vector.shape_cast %20 : vector<2x1xf32> to vector<2x1x1xf32>
    %22 = vector.broadcast %21 : vector<2x1x1xf32> to vector<2x1x8xf32>
    %23 = arith.subf %19, %22 : vector<2x1x8xf32>
    %24 = math.exp %23 : vector<2x1x8xf32>
    %cst_15 = arith.constant dense<0.000000e+00> : vector<2x1xf32>
    %25 = vector.multi_reduction <add>, %24, %cst_15 [2] : vector<2x1x8xf32> to vector<2x1xf32>
    %26 = vector.shape_cast %25 : vector<2x1xf32> to vector<2x1x1xf32>
    %27 = tpu.reciprocal %26 {approx = true} : vector<2x1x1xf32> -> vector<2x1x1xf32>
    %28 = vector.broadcast %27 : vector<2x1x1xf32> to vector<2x1x8xf32>
    %29 = arith.mulf %24, %28 : vector<2x1x8xf32>
    %c0_16 = arith.constant 0 : index
    %c0_17 = arith.constant 0 : index
    %c0_18 = arith.constant 0 : index
    %30 = vector.load %arg7[%c0_16, %c0_17, %c0_18] : memref<2x1x8xf32, #tpu.memory_space<vmem>>, vector<2x1x8xf32>
    tpu.vector_store %arg7[%c0_16, %c0_17, %c0_18], %29 {strides = array<i32>} : memref<2x1x8xf32, #tpu.memory_space<vmem>>, vector<2x1x8xf32>,
    return
  }
  func.func @transform_0(%arg0: i32) -> (i32, i32, i32) {
    %c0_i32 = arith.constant 0 : i32
    %c0_i32_0 = arith.constant 0 : i32
    %c0_i32_1 = arith.constant 0 : i32
    return %arg0, %c0_i32, %c0_i32_0 : i32, i32, i32
  }
  func.func @transform_1(%arg0: i32) -> (i32, i32) {
    %c0_i32 = arith.constant 0 : i32
    %c0_i32_0 = arith.constant 0 : i32
    return %arg0, %c0_i32 : i32, i32
  }
  func.func @transform_2(%arg0: i32) -> (i32, i32) {
    %c0_i32 = arith.constant 0 : i32
    %c0_i32_0 = arith.constant 0 : i32
    %c0_i32_1 = arith.constant 0 : i32
    return %c0_i32, %c0_i32_0 : i32, i32
  }
  func.func @transform_3(%arg0: i32) -> (i32, i32) {
    %c0_i32 = arith.constant 0 : i32
    %c0_i32_0 = arith.constant 0 : i32
    %c0_i32_1 = arith.constant 0 : i32
    return %c0_i32, %c0_i32_0 : i32, i32
  }
  func.func @transform_4(%arg0: i32) -> (i32, i32) {
    %c0_i32 = arith.constant 0 : i32
    %c0_i32_0 = arith.constant 0 : i32
    %c0_i32_1 = arith.constant 0 : i32
    return %c0_i32, %c0_i32_0 : i32, i32
  }
  func.func @transform_5(%arg0: i32) -> (i32, i32) {
    %c0_i32 = arith.constant 0 : i32
    %c0_i32_0 = arith.constant 0 : i32
    %c0_i32_1 = arith.constant 0 : i32
    return %c0_i32, %c0_i32_0 : i32, i32
  }
  func.func @transform_6(%arg0: i32) -> (i32, i32, i32) {
    %c0_i32 = arith.constant 0 : i32
    %c0_i32_0 = arith.constant 0 : i32
    %c0_i32_1 = arith.constant 0 : i32
    return %arg0, %c0_i32, %c0_i32_0 : i32, i32, i32
  }
}

</mosaic_0001>

<llo_original>
// kernel: tpu_custom_call.1
$region0: #{tpu_custom_call.1}
  #allocation0 [shape = 'u32[]', space=smem, size = 0x4, offset = 0x4, fixed_abs, tag = 'smem constant byte address 0x4 - core index']
  #allocation1 [shape = 'u32[144,128]{1,0:T(1,128)}', space=vmem, size = 0x12000, scoped, tag = 'internal scratch']
  %s0 = inlined_call_operand.hbm [shape: f32[2,8,32], index: 0, kind: input, shape index: {}]
  %s1 = inlined_call_operand.hbm [shape: f32[2,32], index: 1, kind: input, shape index: {}]
  %s2 = inlined_call_operand.hbm [shape: f32[32,32], index: 2, kind: input, shape index: {}]
  %s3 = inlined_call_operand.hbm [shape: f32[32,32], index: 3, kind: input, shape index: {}]
  %s4 = inlined_call_operand.vmem [shape: f32[1,32], index: 4, kind: input, shape index: {}]
  %s5 = inlined_call_operand.vmem [shape: f32[1,32], index: 5, kind: input, shape index: {}]
  %s6 = inlined_call_operand.hbm [shape: f32[2,1,8], index: 6, kind: output, shape index: {}]
  %s7 = sld [smem:[#allocation0]]
  $region50: #{tpu_custom_call.1} parent=0
    _
  %s9 = ssub.s32 1, %s7
  %s10 = scalar_select 0, %s9, %s7
  $region1: #{tpu_custom_call.1} parent=0
    #allocation2 [shape = 'u8[8192]{0}', space=vmem, size = 0x2000, scoped, tag = 'input window, operand 0, single buffered']
    #allocation3 [shape = 's32[1]{0}', space=sflag, size = 0x4, scoped, tag = 'scoped memory for tpu_custom_call.1']
    #allocation4 [shape = 's32[1]{0}', space=sflag, size = 0x4, scoped, tag = 'scoped memory for tpu_custom_call.1']
    #allocation5 [shape = 'u8[1024]{0}', space=vmem, size = 0x400, scoped, tag = 'input window, operand 1, single buffered']
    #allocation6 [shape = 's32[1]{0}', space=sflag, size = 0x4, scoped, tag = 'scoped memory for tpu_custom_call.1']
    #allocation7 [shape = 'u8[16384]{0}', space=vmem, size = 0x4000, scoped, tag = 'input window, operand 2, single buffered']
    #allocation8 [shape = 'u8[16384]{0}', space=vmem, size = 0x4000, scoped, tag = 'input window, operand 3, single buffered']
    #allocation9 [shape = 's32[1]{0}', space=sflag, size = 0x4, scoped, tag = 'scoped memory for tpu_custom_call.1']
    #allocation10 [shape = 'u8[1024]{0}', space=vmem, size = 0x400, scoped, tag = 'output window, operand 0, single buffered']
    %11 = vsyncpa [#allocation3], 0
    %12 = vsyncpa [#allocation6], 0
    %13 = vsyncpa [#allocation9], 0
    %14 = vsyncpa [#allocation4], 0
    // Predicated region
    $region2: #{tpu_custom_call.1} parent=1 // pred_check
      _
    $region3: #{tpu_custom_call.1} parent=1 // pred_check_branch
      %16 = sbr.rel (0) target = $region5
    $region4: #{tpu_custom_call.1} parent=1 // pred_region
      %s18 = ssub.s32 256, 256
      %19 = vsyncadd [#allocation3], %s18
      %s20 = sshll.u32 [#allocation2], 4
      %s21 = int_to_ptr.vmem [resolvable:$true] %s20
      %26 = dma.hbm_to_vmem [thread:$0]  %s0, 256, %s21, [#allocation3], 128, 128, 8
    $region5: #{tpu_custom_call.1} parent=1 // pred_fallthru
      _
    // Predicated region
    $region6: #{tpu_custom_call.1} parent=1 // pred_check
      _
    $region7: #{tpu_custom_call.1} parent=1 // pred_check_branch
      %28 = sbr.rel (0) target = $region9
    $region8: #{tpu_custom_call.1} parent=1 // pred_region
      %s30 = ssub.s32 32, 32
      %31 = vsyncadd [#allocation6], %s30
      %s33 = sshll.u32 [#allocation5], 4
      %s34 = int_to_ptr.vmem [resolvable:$true] %s33
      %36 = dma.hbm_to_vmem [thread:$0]  %s1, 32, %s34, [#allocation6]
    $region9: #{tpu_custom_call.1} parent=1 // pred_fallthru
      _
    // Predicated region
    $region10: #{tpu_custom_call.1} parent=1 // pred_check
      _
    $region11: #{tpu_custom_call.1} parent=1 // pred_check_branch
      %38 = sbr.rel (0) target = $region13
    $region12: #{tpu_custom_call.1} parent=1 // pred_region
      %s40 = ssub.s32 512, 512
      %41 = vsyncadd [#allocation6], %s40
      %s42 = sshll.u32 [#allocation7], 4
      %s43 = int_to_ptr.vmem [resolvable:$true] %s42
      %48 = dma.hbm_to_vmem [thread:$0]  %s2, 512, %s43, [#allocation6], 128, 128, 8
    $region13: #{tpu_custom_call.1} parent=1 // pred_fallthru
      _
    // Predicated region
    $region14: #{tpu_custom_call.1} parent=1 // pred_check
      _
    $region15: #{tpu_custom_call.1} parent=1 // pred_check_branch
      %50 = sbr.rel (0) target = $region17
    $region16: #{tpu_custom_call.1} parent=1 // pred_region
      %s52 = ssub.s32 512, 512
      %53 = vsyncadd [#allocation9], %s52
      %s54 = sshll.u32 [#allocation8], 4
      %s55 = int_to_ptr.vmem [resolvable:$true] %s54
      %60 = dma.hbm_to_vmem [thread:$0]  %s3, 512, %s55, [#allocation9], 128, 128, 8
    $region17: #{tpu_custom_call.1} parent=1 // pred_fallthru
      _
    // Predicated region
    $region18: #{tpu_custom_call.1} parent=1 // pred_check
      _
    $region19: #{tpu_custom_call.1} parent=1 // pred_check_branch
      %62 = sbr.rel (0) target = $region21
    $region20: #{tpu_custom_call.1} parent=1 // pred_region
      _
    $region21: #{tpu_custom_call.1} parent=1 // pred_fallthru
      _
    // Predicated region
    $region22: #{tpu_custom_call.1} parent=1 // pred_check
      _
    $region23: #{tpu_custom_call.1} parent=1 // pred_check_branch
      %64 = sbr.rel (0) target = $region25
    $region24: #{tpu_custom_call.1} parent=1 // pred_region
      _
    $region25: #{tpu_custom_call.1} parent=1 // pred_fallthru
      _
    // Predicated region
    $region26: #{tpu_custom_call.1} parent=1 // pred_check
      _
    $region27: #{tpu_custom_call.1} parent=1 // pred_check_branch
      %66 = sbr.rel (0) target = $region29
    $region28: #{tpu_custom_call.1} parent=1 // pred_region
      %67 = dma.done [#allocation3], 256
    $region29: #{tpu_custom_call.1} parent=1 // pred_fallthru
      _
    // Predicated region
    $region30: #{tpu_custom_call.1} parent=1 // pred_check
      _
    $region31: #{tpu_custom_call.1} parent=1 // pred_check_branch
      %69 = sbr.rel (0) target = $region33
    $region32: #{tpu_custom_call.1} parent=1 // pred_region
      %70 = dma.done [#allocation6], 32
    $region33: #{tpu_custom_call.1} parent=1 // pred_fallthru
      _
    // Predicated region
    $region34: #{tpu_custom_call.1} parent=1 // pred_check
      _
    $region35: #{tpu_custom_call.1} parent=1 // pred_check_branch
      %72 = sbr.rel (0) target = $region37
    $region36: #{tpu_custom_call.1} parent=1 // pred_region
      %73 = dma.done [#allocation6], 512
    $region37: #{tpu_custom_call.1} parent=1 // pred_fallthru
      _
    // Predicated region
    $region38: #{tpu_custom_call.1} parent=1 // pred_check
      _
    $region39: #{tpu_custom_call.1} parent=1 // pred_check_branch
      %75 = sbr.rel (0) target = $region41
    $region40: #{tpu_custom_call.1} parent=1 // pred_region
      %76 = dma.done [#allocation9], 512
    $region41: #{tpu_custom_call.1} parent=1 // pred_fallthru
      _
    %v77 = vld [vmem:[#allocation5] sm:$0x3]
    %v78 = vld [vmem:[#allocation7] sm:$0xff]
    %v79 = vld [vmem:[#allocation7 + $0x8] sm:$0xff]
    %v80 = vld [vmem:[#allocation7 + $0x10] sm:$0xff]
    %v81 = vld [vmem:[#allocation7 + $0x18] sm:$0xff]
    %v82 = vld [vmem:[%s4] sm:$0x1]
    %v84 = vlaneseq
    %v85 = vshrl.u32 %v84, 7
    %v86 = vsub.s32 0, %v85
    %v87 = vrot.slane %v82, %v86
    %vm89 = vcmask 261120
    %v91 = vsel %vm89, %v77, 0
    %93 = vmatprep.subr.mxu0 0.0
    %94 = vmatpush1.msra.mxu0 0.0
    %95 = vmatprep.subr.mxu0 0.0
    %96 = vmatpush1.msra.mxu0 0.0
    %97 = vmatprep.subr.mxu0 0.0
    %98 = vmatpush1.msra.mxu0 0.0
    %99 = vmatprep.subr.mxu0 0.0
    %100 = vmatpush1.msra.mxu0 0.0
    %101 = vmatprep.subr.mxu0 0.0
    %102 = vmatpush1.msra.mxu0 0.0
    %103 = vmatprep.subr.mxu0 0.0
    %104 = vmatpush1.msra.mxu0 0.0
    %105 = vmatprep.subr.mxu0 0.0
    %106 = vmatpush1.msra.mxu0 0.0
    %107 = vmatprep.subr.mxu0 0.0
    %108 = vmatpush1.msra.mxu0 0.0
    %109 = vmatprep.subr.mxu0 0.0
    %110 = vmatpush1.msra.mxu0 0.0
    %111 = vmatprep.subr.mxu0 0.0
    %112 = vmatpush1.msra.mxu0 0.0
    %113 = vmatprep.subr.mxu0 0.0
    %114 = vmatpush1.msra.mxu0 0.0
    %115 = vmatprep.subr.mxu0 0.0
    %116 = vmatpush1.msra.mxu0 0.0
    %117 = vmatprep.subr.mxu0 0.0
    %118 = vmatpush1.msra.mxu0 %v81
    %119 = vmatprep.subr.mxu0 0.0
    %120 = vmatpush1.msra.mxu0 %v80
    %121 = vmatprep.subr.mxu0 0.0
    %122 = vmatpush1.msra.mxu0 %v79
    %123 = vmatprep.subr.mxu0 0.0
    %124 = vmatpush1.msra.mxu0 %v78
    %125 = vmatprep.subr.mxu0 0.0
    %126 = vmatpush2.msra.mxu0 0.0
    %127 = vmatprep.subr.mxu0 0.0
    %128 = vmatpush2.msra.mxu0 0.0
    %129 = vmatprep.subr.mxu0 0.0
    %130 = vmatpush2.msra.mxu0 0.0
    %131 = vmatprep.subr.mxu0 0.0
    %132 = vmatpush2.msra.mxu0 0.0
    %133 = vmatprep.subr.mxu0 0.0
    %134 = vmatpush2.msra.mxu0 0.0
    %135 = vmatprep.subr.mxu0 0.0
    %136 = vmatpush2.msra.mxu0 0.0
    %137 = vmatprep.subr.mxu0 0.0
    %138 = vmatpush2.msra.mxu0 0.0
    %139 = vmatprep.subr.mxu0 0.0
    %140 = vmatpush2.msra.mxu0 0.0
    %141 = vmatprep.subr.mxu0 0.0
    %142 = vmatpush2.msra.mxu0 0.0
    %143 = vmatprep.subr.mxu0 0.0
    %144 = vmatpush2.msra.mxu0 0.0
    %145 = vmatprep.subr.mxu0 0.0
    %146 = vmatpush2.msra.mxu0 0.0
    %147 = vmatprep.subr.mxu0 0.0
    %148 = vmatpush2.msra.mxu0 0.0
    %149 = vmatprep.subr.mxu0 0.0
    %150 = vmatpush2.msra.mxu0 0.0
    %151 = vmatprep.subr.mxu0 0.0
    %152 = vmatpush2.msra.mxu0 0.0
    %153 = vmatprep.subr.mxu0 0.0
    %154 = vmatpush2.msra.mxu0 0.0
    %155 = vmatprep.subr.mxu0 0.0
    %156 = vmatpush2.msra.mxu0 0.0
    %157 = vmatprep.mubr.f32.mxu0 0.0
    %158 = vmatmul.mubr.f32.gmra.mxu0 %v91
    %v159 = vpop.f32.mrf.mxu0
    %v160 = vadd.f32 %v87, %v159
    %v161 = vpop.f32.mrf.mxu0
    %162 = vdwg.mxu0
    %v163 = vld [vmem:[#allocation2] sm:$0xff]
    %v164 = vld [vmem:[#allocation2 + $0x8] sm:$0xff]
    %v165 = vld [vmem:[#allocation8] sm:$0xff]
    %v166 = vld [vmem:[#allocation8 + $0x8] sm:$0xff]
    %v167 = vld [vmem:[#allocation8 + $0x10] sm:$0xff]
    %v168 = vld [vmem:[#allocation8 + $0x18] sm:$0xff]
    %v170 = vsel %vm89, %v163, 0
    %v173 = vsel %vm89, %v164, 0
    %175 = vmatprep.subr.mxu0 0.0
    %176 = vmatpush1.msra.mxu0 0.0
    %177 = vmatprep.subr.mxu0 0.0
    %178 = vmatpush1.msra.mxu0 0.0
    %179 = vmatprep.subr.mxu0 0.0
    %180 = vmatpush1.msra.mxu0 0.0
    %181 = vmatprep.subr.mxu0 0.0
    %182 = vmatpush1.msra.mxu0 0.0
    %183 = vmatprep.subr.mxu0 0.0
    %184 = vmatpush1.msra.mxu0 0.0
    %185 = vmatprep.subr.mxu0 0.0
    %186 = vmatpush1.msra.mxu0 0.0
    %187 = vmatprep.subr.mxu0 0.0
    %188 = vmatpush1.msra.mxu0 0.0
    %189 = vmatprep.subr.mxu0 0.0
    %190 = vmatpush1.msra.mxu0 0.0
    %191 = vmatprep.subr.mxu0 0.0
    %192 = vmatpush1.msra.mxu0 0.0
    %193 = vmatprep.subr.mxu0 0.0
    %194 = vmatpush1.msra.mxu0 0.0
    %195 = vmatprep.subr.mxu0 0.0
    %196 = vmatpush1.msra.mxu0 0.0
    %197 = vmatprep.subr.mxu0 0.0
    %198 = vmatpush1.msra.mxu0 0.0
    %199 = vmatprep.subr.mxu0 0.0
    %200 = vmatpush1.msra.mxu0 %v168
    %201 = vmatprep.subr.mxu0 0.0
    %202 = vmatpush1.msra.mxu0 %v167
    %203 = vmatprep.subr.mxu0 0.0
    %204 = vmatpush1.msra.mxu0 %v166
    %205 = vmatprep.subr.mxu0 0.0
    %206 = vmatpush1.msra.mxu0 %v165
    %207 = vmatprep.subr.mxu0 0.0
    %208 = vmatpush2.msra.mxu0 0.0
    %209 = vmatprep.subr.mxu0 0.0
    %210 = vmatpush2.msra.mxu0 0.0
    %211 = vmatprep.subr.mxu0 0.0
    %212 = vmatpush2.msra.mxu0 0.0
    %213 = vmatprep.subr.mxu0 0.0
    %214 = vmatpush2.msra.mxu0 0.0
    %215 = vmatprep.subr.mxu0 0.0
    %216 = vmatpush2.msra.mxu0 0.0
    %217 = vmatprep.subr.mxu0 0.0
    %218 = vmatpush2.msra.mxu0 0.0
    %219 = vmatprep.subr.mxu0 0.0
    %220 = vmatpush2.msra.mxu0 0.0
    %221 = vmatprep.subr.mxu0 0.0
    %222 = vmatpush2.msra.mxu0 0.0
    %223 = vmatprep.subr.mxu0 0.0
    %224 = vmatpush2.msra.mxu0 0.0
    %225 = vmatprep.subr.mxu0 0.0
    %226 = vmatpush2.msra.mxu0 0.0
    %227 = vmatprep.subr.mxu0 0.0
    %228 = vmatpush2.msra.mxu0 0.0
    %229 = vmatprep.subr.mxu0 0.0
    %230 = vmatpush2.msra.mxu0 0.0
    %231 = vmatprep.subr.mxu0 0.0
    %232 = vmatpush2.msra.mxu0 0.0
    %233 = vmatprep.subr.mxu0 0.0
    %234 = vmatpush2.msra.mxu0 0.0
    %235 = vmatprep.subr.mxu0 0.0
    %236 = vmatpush2.msra.mxu0 0.0
    %237 = vmatprep.subr.mxu0 0.0
    %238 = vmatpush2.msra.mxu0 0.0
    %239 = vmatprep.mubr.f32.mxu0 0.0
    %240 = vmatmul.mubr.f32.gmra.mxu0 %v170
    %v241 = vpop.f32.mrf.mxu0
    %v242 = vadd.f32 0.0, %v241
    %v243 = vpop.f32.mrf.mxu0
    %244 = vmatprep.mubr.f32.mxu0 0.0
    %245 = vmatmul.mubr.f32.gmra.mxu0 %v173
    %v246 = vpop.f32.mrf.mxu0
    %v247 = vadd.f32 0.0, %v246
    %v248 = vpop.f32.mrf.mxu0
    %249 = vdwg.mxu0
    %v252 = vunpack.c.l.s4 1966171168
    %v253 = vunpack.c.0.s8 %v252
    %v254 = vlaneseq
    %v255 = vshrl.u32 %v254, 7
    %v256 = vsub.s32 %v253, %v255
    %v257 = vrot.slane %v160, %v256
    %v258 = vcombine.high %v257, %v257
    %v260 = vunpack.c.l.s4 1966171168
    %v261 = vunpack.c.0.s8 %v260
    %v262 = vlaneseq
    %v263 = vshrl.u32 %v262, 7
    %v264 = vsub.s32 %v261, %v263
    %v265 = vrot.slane %v257, %v264
    %v267 = vunpack.c.l.s4 1966171168
    %v268 = vunpack.c.0.s8 %v267
    %v269 = vlaneseq
    %v270 = vshrl.u32 %v269, 7
    %v271 = vsub.s32 %v268, %v270
    %v272 = vrot.slane %v258, %v271
    %v273 = vlaneseq
    %v274 = vshrl.u32 %v273, 7
    %v275 = vsub.s32 0, %v274
    %v276 = vrot.slane %v265, %v275
    %v277 = vlaneseq
    %v278 = vshrl.u32 %v277, 7
    %v279 = vsub.s32 0, %v278
    %v280 = vrot.slane %v272, %v279
    %v283 = vadd.f32 %v242, %v276
    %v284 = vadd.f32 %v247, %v280
    %v285 = vtanh.pop %v283
    %v286 = vtanh.pop %v284
    %v287 = vld [vmem:[%s5] sm:$0x1]
    %v289 = vsel %vm89, %v287, 0
    %v292 = vsel %vm89, %v285, 0
    %294 = vmatprep.subr.mxu0 0.0
    %295 = vmatpush1.xpose.msra.mxu0 0.0
    %296 = vmatprep.subr.mxu0 0.0
    %297 = vmatpush1.xpose.msra.mxu0 0.0
    %298 = vmatprep.subr.mxu0 0.0
    %299 = vmatpush1.xpose.msra.mxu0 0.0
    %300 = vmatprep.subr.mxu0 0.0
    %301 = vmatpush1.xpose.msra.mxu0 0.0
    %302 = vmatprep.subr.mxu0 0.0
    %303 = vmatpush1.xpose.msra.mxu0 0.0
    %304 = vmatprep.subr.mxu0 0.0
    %305 = vmatpush1.xpose.msra.mxu0 0.0
    %306 = vmatprep.subr.mxu0 0.0
    %307 = vmatpush1.xpose.msra.mxu0 0.0
    %308 = vmatprep.subr.mxu0 0.0
    %309 = vmatpush1.xpose.msra.mxu0 0.0
    %310 = vmatprep.subr.mxu0 0.0
    %311 = vmatpush1.xpose.msra.mxu0 0.0
    %312 = vmatprep.subr.mxu0 0.0
    %313 = vmatpush1.xpose.msra.mxu0 0.0
    %314 = vmatprep.subr.mxu0 0.0
    %315 = vmatpush1.xpose.msra.mxu0 0.0
    %316 = vmatprep.subr.mxu0 0.0
    %317 = vmatpush1.xpose.msra.mxu0 0.0
    %318 = vmatprep.subr.mxu0 0.0
    %319 = vmatpush1.xpose.msra.mxu0 0.0
    %320 = vmatprep.subr.mxu0 0.0
    %321 = vmatpush1.xpose.msra.mxu0 0.0
    %322 = vmatprep.subr.mxu0 0.0
    %323 = vmatpush1.xpose.msra.mxu0 0.0
    %324 = vmatprep.subr.mxu0 0.0
    %325 = vmatpush1.xpose.msra.mxu0 %v292
    %326 = vmatprep.subr.mxu0 0.0
    %327 = vmatpush2.xpose.msra.mxu0 0.0
    %328 = vmatprep.subr.mxu0 0.0
    %329 = vmatpush2.xpose.msra.mxu0 0.0
    %330 = vmatprep.subr.mxu0 0.0
    %331 = vmatpush2.xpose.msra.mxu0 0.0
    %332 = vmatprep.subr.mxu0 0.0
    %333 = vmatpush2.xpose.msra.mxu0 0.0
    %334 = vmatprep.subr.mxu0 0.0
    %335 = vmatpush2.xpose.msra.mxu0 0.0
    %336 = vmatprep.subr.mxu0 0.0
    %337 = vmatpush2.xpose.msra.mxu0 0.0
    %338 = vmatprep.subr.mxu0 0.0
    %339 = vmatpush2.xpose.msra.mxu0 0.0
    %340 = vmatprep.subr.mxu0 0.0
    %341 = vmatpush2.xpose.msra.mxu0 0.0
    %342 = vmatprep.subr.mxu0 0.0
    %343 = vmatpush2.xpose.msra.mxu0 0.0
    %344 = vmatprep.subr.mxu0 0.0
    %345 = vmatpush2.xpose.msra.mxu0 0.0
    %346 = vmatprep.subr.mxu0 0.0
    %347 = vmatpush2.xpose.msra.mxu0 0.0
    %348 = vmatprep.subr.mxu0 0.0
    %349 = vmatpush2.xpose.msra.mxu0 0.0
    %350 = vmatprep.subr.mxu0 0.0
    %351 = vmatpush2.xpose.msra.mxu0 0.0
    %352 = vmatprep.subr.mxu0 0.0
    %353 = vmatpush2.xpose.msra.mxu0 0.0
    %354 = vmatprep.subr.mxu0 0.0
    %355 = vmatpush2.xpose.msra.mxu0 0.0
    %356 = vmatprep.subr.mxu0 0.0
    %357 = vmatpush2.xpose.msra.mxu0 0.0
    %358 = vmatprep.mubr.f32.mxu0 0.0
    %359 = vmatmul.mubr.f32.gmra.mxu0 %v289
    %v360 = vpop.f32.mrf.mxu0
    %v361 = vadd.f32 0.0, %v360
    %v362 = vpop.f32.mrf.mxu0
    %363 = vdwg.mxu0
    %v365 = vsel %vm89, %v286, 0
    %367 = vmatprep.subr.mxu0 0.0
    %368 = vmatpush1.xpose.msra.mxu0 0.0
    %369 = vmatprep.subr.mxu0 0.0
    %370 = vmatpush1.xpose.msra.mxu0 0.0
    %371 = vmatprep.subr.mxu0 0.0
    %372 = vmatpush1.xpose.msra.mxu0 0.0
    %373 = vmatprep.subr.mxu0 0.0
    %374 = vmatpush1.xpose.msra.mxu0 0.0
    %375 = vmatprep.subr.mxu0 0.0
    %376 = vmatpush1.xpose.msra.mxu0 0.0
    %377 = vmatprep.subr.mxu0 0.0
    %378 = vmatpush1.xpose.msra.mxu0 0.0
    %379 = vmatprep.subr.mxu0 0.0
    %380 = vmatpush1.xpose.msra.mxu0 0.0
    %381 = vmatprep.subr.mxu0 0.0
    %382 = vmatpush1.xpose.msra.mxu0 0.0
    %383 = vmatprep.subr.mxu0 0.0
    %384 = vmatpush1.xpose.msra.mxu0 0.0
    %385 = vmatprep.subr.mxu0 0.0
    %386 = vmatpush1.xpose.msra.mxu0 0.0
    %387 = vmatprep.subr.mxu0 0.0
    %388 = vmatpush1.xpose.msra.mxu0 0.0
    %389 = vmatprep.subr.mxu0 0.0
    %390 = vmatpush1.xpose.msra.mxu0 0.0
    %391 = vmatprep.subr.mxu0 0.0
    %392 = vmatpush1.xpose.msra.mxu0 0.0
    %393 = vmatprep.subr.mxu0 0.0
    %394 = vmatpush1.xpose.msra.mxu0 0.0
    %395 = vmatprep.subr.mxu0 0.0
    %396 = vmatpush1.xpose.msra.mxu0 0.0
    %397 = vmatprep.subr.mxu0 0.0
    %398 = vmatpush1.xpose.msra.mxu0 %v365
    %399 = vmatprep.subr.mxu0 0.0
    %400 = vmatpush2.xpose.msra.mxu0 0.0
    %401 = vmatprep.subr.mxu0 0.0
    %402 = vmatpush2.xpose.msra.mxu0 0.0
    %403 = vmatprep.subr.mxu0 0.0
    %404 = vmatpush2.xpose.msra.mxu0 0.0
    %405 = vmatprep.subr.mxu0 0.0
    %406 = vmatpush2.xpose.msra.mxu0 0.0
    %407 = vmatprep.subr.mxu0 0.0
    %408 = vmatpush2.xpose.msra.mxu0 0.0
    %409 = vmatprep.subr.mxu0 0.0
    %410 = vmatpush2.xpose.msra.mxu0 0.0
    %411 = vmatprep.subr.mxu0 0.0
    %412 = vmatpush2.xpose.msra.mxu0 0.0
    %413 = vmatprep.subr.mxu0 0.0
    %414 = vmatpush2.xpose.msra.mxu0 0.0
    %415 = vmatprep.subr.mxu0 0.0
    %416 = vmatpush2.xpose.msra.mxu0 0.0
    %417 = vmatprep.subr.mxu0 0.0
    %418 = vmatpush2.xpose.msra.mxu0 0.0
    %419 = vmatprep.subr.mxu0 0.0
    %420 = vmatpush2.xpose.msra.mxu0 0.0
    %421 = vmatprep.subr.mxu0 0.0
    %422 = vmatpush2.xpose.msra.mxu0 0.0
    %423 = vmatprep.subr.mxu0 0.0
    %424 = vmatpush2.xpose.msra.mxu0 0.0
    %425 = vmatprep.subr.mxu0 0.0
    %426 = vmatpush2.xpose.msra.mxu0 0.0
    %427 = vmatprep.subr.mxu0 0.0
    %428 = vmatpush2.xpose.msra.mxu0 0.0
    %429 = vmatprep.subr.mxu0 0.0
    %430 = vmatpush2.xpose.msra.mxu0 0.0
    %431 = vmatprep.mubr.f32.mxu0 0.0
    %432 = vmatmul.mubr.f32.gmra.mxu0 %v289
    %v433 = vpop.f32.mrf.mxu0
    %v434 = vadd.f32 0.0, %v433
    %v435 = vpop.f32.mrf.mxu0
    %436 = vdwg.mxu0
    %vm437 = vcmask 57344
    %v438 = vsel %vm437, %v361, -inf
    %439 = vmax.xlane.f32.xlu0 %v438
    %v440 = vpop.xlane.xlu0 %439
    %v441 = vsel %vm437, %v434, -inf
    %442 = vmax.xlane.f32.xlu0 %v441
    %v443 = vpop.xlane.xlu0 %442
    %v444 = vsub.f32 %v361, %v440
    %v445 = vsub.f32 %v434, %v443
    %v446 = vmul.f32 %v444, 1.442695
    %v447 = vpow.pop %v446
    %v448 = vmul.f32 %v445, 1.442695
    %v449 = vpow.pop %v448
    %v450 = vsel %vm437, %v447, 0.0
    %451 = vadd.xlane.f32.xlu0 %v450
    %v452 = vpop.xlane.xlu0 %451
    %v453 = vsel %vm437, %v449, 0.0
    %454 = vadd.xlane.f32.xlu0 %v453
    %v455 = vpop.xlane.xlu0 %454
    %v456 = vrcp.pop %v452
    %v457 = vrcp.pop %v455
    %v458 = vmul.f32 %v447, %v456
    %v459 = vmul.f32 %v449, %v457
    %460 = vst.msk [vmem:[#allocation10] sm:$0x1] %vm437, %v458
    %461 = vst.msk [vmem:[#allocation10 + $0x1] sm:$0x1] %vm437, %v459
    // Predicated region
    $region42: #{tpu_custom_call.1} parent=1 // pred_check
      _
    $region43: #{tpu_custom_call.1} parent=1 // pred_check_branch
      %463 = sbr.rel (0) target = $region45
    $region44: #{tpu_custom_call.1} parent=1 // pred_region
      %s465 = ssub.s32 32, 32
      %466 = vsyncadd [#allocation4], %s465
      %s467 = sshll.u32 [#allocation10], 4
      %s468 = int_to_ptr.vmem [resolvable:$true] %s467
      %473 = dma.vmem_to_hbm [thread:$0]  %s468, 32, %s6, [#allocation4], 16, 16, 1
    $region45: #{tpu_custom_call.1} parent=1 // pred_fallthru
      _
    // Predicated region
    $region46: #{tpu_custom_call.1} parent=1 // pred_check
      _
    $region47: #{tpu_custom_call.1} parent=1 // pred_check_branch
      %475 = sbr.rel (0) target = $region49
    $region48: #{tpu_custom_call.1} parent=1 // pred_region
      %476 = dma.done [#allocation4], 32
    $region49: #{tpu_custom_call.1} parent=1 // pred_fallthru
      _
    %477 = vsyncpa [#allocation3], 1
    %478 = vsyncpa [#allocation6], 1
    %479 = vsyncpa [#allocation9], 1
    %480 = vsyncpa [#allocation4], 1

</llo_original>
